<compile_context>
chip_gen: v6e
topology: v6e:2x2x1
jax: 0.10.0
libtpu: 0.0.40
codegen_flags: <defaults>
</compile_context>

<pallas_src>
import jax
import jax.numpy as jnp
from jax.experimental import pallas as pl
from jax.experimental.pallas import tpu as pltpu


_LANE = 128
_MAX_COLS = 2048


def _drop_path_kernel(scale_ref, x_ref, o_ref):
    # scale_ref: (tile_r, 1) f32 per-row scale (mask / keep_prob).
    # x_ref / o_ref: (tile_r, cols) in x.dtype.  Multiply in f32, cast once.
    o_ref[...] = (x_ref[...] * scale_ref[...]).astype(o_ref.dtype)


def _round_up(v, m):
    return ((v + m - 1) // m) * m


def _cdiv(a, b):
    return -(-a // b)


def _pick_cols(n):
    """Largest multiple of 128 that is <= _MAX_COLS and divides n (n % 128 == 0)."""
    for c in range(_MAX_COLS, _LANE - 1, -_LANE):
        if n % c == 0:
            return c
    return _LANE  # unreachable when n % 128 == 0


def _chip_params():
    """Returns (two_tensorcores, target_block_bytes, vmem_limit_bytes)."""
    try:
        vmem_cap = int(pltpu.get_tpu_info().vmem_capacity_bytes)
    except Exception:
        vmem_cap = 0
    if 0 < vmem_cap <= 96 * 1024 * 1024:
        # v7x-like: 64 MiB VMEM per TensorCore, 2 TCs/chip, ~3.2 TB/s HBM.
        # Bigger blocks amortize the ~0.35 us per-grid-step overhead;
        # 4 x 8 MiB double-buffered in+out stays well under 64 MiB.
        return True, 8 * 1024 * 1024, 48 * 1024 * 1024
    if vmem_cap > 96 * 1024 * 1024:
        # v5e / v6e-like: 128 MiB VMEM, single TensorCore.
        return False, 12 * 1024 * 1024, 80 * 1024 * 1024
    # Unknown backend (e.g. interpret mode): conservative defaults.
    return False, 4 * 1024 * 1024, 40 * 1024 * 1024


def drop_path(x, drop_prob: float = 0.0, training: bool = False, *, key=None):
    """Same semantics as the PyTorch drop_path: per-sample binary keep mask,
    kept samples scaled by 1/keep_prob. Identity when drop_prob == 0 or eval."""
    if drop_prob == 0.0 or not training:
        return x
    if key is None:
        raise ValueError("drop_path needs a PRNG `key` when training with drop_prob > 0")
    keep_prob = 1.0 - drop_prob
    if keep_prob <= 0.0:
        # drop_prob >= 1: every sample is dropped; guard the 0/0 divide.
        return jnp.zeros_like(x)

    orig_shape = x.shape
    B = int(orig_shape[0])
    N = 1
    for d in orig_shape[1:]:
        N *= int(d)

    # Per-sample scale, kept in f32 (unbiased floor, 1/keep_prob folded in).
    u = jax.random.uniform(key, (B,), dtype=jnp.float32)
    scale = jnp.floor(keep_prob + u) / keep_prob  # stays float32

    itemsize = jnp.dtype(x.dtype).itemsize
    sublane = max(8, 32 // itemsize)  # 8 for f32, 16 for bf16, 32 for int8
    two_cores, target_block, vmem_limit = _chip_params()

    xf = x.reshape(B, N)
    padded = False
    if N % _LANE == 0:
        cols = _pick_cols(N)
    else:
        # Ragged path: block's last dim = full extent N (legal for any N),
        # so no pad/slice HBM round-trip.
        cols = N
        min_rows = B if B <= sublane else sublane
        if min_rows * cols * itemsize * 4 > int(0.85 * vmem_limit):
            # Pathological: even the minimal full-width block would blow the
            # VMEM budget; fall back to pad + slice (correct, just slower).
            n_pad = _round_up(N, _LANE)
            xf = jnp.pad(xf, ((0, 0), (0, n_pad - N)))
            cols = _pick_cols(n_pad)
            padded = True

    n_total = int(xf.shape[1])
    rows_per_sample = n_total // cols
    R = B * rows_per_sample
    xr = xf.reshape(R, cols)
    if rows_per_sample == 1:
        scale_rows = scale.reshape(R, 1)
    else:
        scale_rows = jnp.repeat(scale, rows_per_sample).reshape(R, 1)

    # Row-tile selection (blocks always span the full column width).
    target_rows = max(sublane, target_block // (cols * itemsize))
    if R <= sublane:
        tile_r = R  # full extent is always a legal block dim
    else:
        tile_r = min(target_rows, R)
        tile_r = max(sublane, (tile_r // sublane) * sublane)
        if two_cores:
            # Keep both TensorCores busy: >= 2 grid steps, even step count.
            if tile_r >= R and R >= 2 * sublane:
                tile_r = max(sublane, _round_up(_cdiv(R, 2), sublane))
            steps = _cdiv(R, tile_r)
            if 1 < steps < 16 and steps % 2 == 1:
                for cand in (tile_r + sublane,
                             max(sublane, _round_up(_cdiv(R, steps + 1), sublane))):
                    cand = min(cand, R)
                    if cand != tile_r and _cdiv(R, cand) % 2 == 0:
                        tile_r = cand
                        break
    grid = (pl.cdiv(R, tile_r),)

    out = pl.pallas_call(
        _drop_path_kernel,
        out_shape=jax.ShapeDtypeStruct((R, cols), x.dtype),
        grid_spec=pltpu.PrefetchScalarGridSpec(
            num_scalar_prefetch=0,
            grid=grid,
            in_specs=[
                pl.BlockSpec((tile_r, 1), lambda i: (i, 0)),      # per-row scale (f32)
                pl.BlockSpec((tile_r, cols), lambda i: (i, 0)),   # x row slab
            ],
            out_specs=pl.BlockSpec((tile_r, cols), lambda i: (i, 0)),
        ),
        compiler_params=pltpu.CompilerParams(
            dimension_semantics=("parallel",),
            vmem_limit_bytes=vmem_limit,
        ),
    )(scale_rows, xr)

    out = out.reshape(B, n_total)
    if padded:
        out = out[:, :N]
    return out.reshape(orig_shape)


class DropPath:
    """Drop paths (Stochastic Depth) per sample."""

    def __init__(self, drop_prob=None):
        self.drop_prob = drop_prob
        self.training = True  # mirror nn.Module default training mode

    def __call__(self, x, *, key=None):
        return drop_path(x, self.drop_prob, self.training, key=key)


def _reference(x, drop_prob, key):
    """Pure-JAX reference with the exact same RNG / mask / f32-scale computation."""
    keep_prob = 1.0 - drop_prob
    B = x.shape[0]
    u = jax.random.uniform(key, (B,), dtype=jnp.float32)
    scale = jnp.floor(keep_prob + u) / keep_prob
    return (x * scale.reshape((B,) + (1,) * (x.ndim - 1))).astype(x.dtype)


if __name__ == "__main__":
    key = jax.random.PRNGKey(0)
    kx, km, kx2, km2, kx3, km3, kx4, km4 = jax.random.split(key, 8)

    module = DropPath(drop_prob=0.5)
    module.training = True

    # Main case: NCHW activation with N = C*H*W a multiple of 128.
    x = jax.random.normal(kx, (2, 4, 16, 16), dtype=jnp.float32)
    y = jax.block_until_ready(module(x, key=km))
    assert jnp.allclose(y, _reference(x, module.drop_prob, km), atol=1e-6, rtol=1e-6)

    # Ragged case: N not a multiple of 128 (full-extent column block, no pad).
    x2 = jax.random.normal(kx2, (2, 3, 5, 7), dtype=jnp.float32)
    y2 = jax.block_until_ready(module(x2, key=km2))
    assert jnp.allclose(y2, _reference(x2, module.drop_prob, km2), atol=1e-6, rtol=1e-6)

    # Partial-row-block case: R not a multiple of tile_r (exercises cdiv boundary).
    x3 = jax.random.normal(kx3, (2, 10, 32, 32), dtype=jnp.float32)
    y3 = jax.block_until_ready(module(x3, key=km3))
    assert jnp.allclose(y3, _reference(x3, module.drop_prob, km3), atol=1e-6, rtol=1e-6)

    # bf16 input: scale stays f32, product cast once to bf16.
    x4 = jax.random.normal(kx4, (4, 8, 16, 16), dtype=jnp.bfloat16)
    y4 = jax.block_until_ready(module(x4, key=km4))
    assert jnp.allclose(y4.astype(jnp.float32),
                        _reference(x4, module.drop_prob, km4).astype(jnp.float32),
                        atol=1e-2, rtol=1e-2)

    # drop_prob == 1.0 guard: everything dropped, no NaN.
    module.drop_prob = 1.0
    y_all = jax.block_until_ready(module(x, key=km))
    assert jnp.array_equal(y_all, jnp.zeros_like(x))
    module.drop_prob = 0.5

    # Eval / drop_prob == 0 paths are identity.
    module.training = False
    assert jnp.array_equal(jax.block_until_ready(module(x, key=km)), x)
    module.training = True
    module.drop_prob = 0.0
    assert jnp.array_equal(jax.block_until_ready(module(x, key=km)), x)

    print("KERNEL_OK")
</pallas_src>

<mosaic_0001>
module attributes {stable_mosaic.version = 11 : i64} {
  func.func @_drop_path_kernel(%arg0: i32, %arg1: memref<2x1xf32, #tpu.memory_space<vmem>>, %arg2: memref<2x1024xf32, #tpu.memory_space<vmem>>, %arg3: memref<2x1024xf32, #tpu.memory_space<vmem>>) attributes {dimension_semantics = [#tpu.dimension_semantics<parallel>], iteration_bounds = array<i64: 1>, scalar_prefetch = 0 : i64, scratch_operands = 0 : i64, tpu.core_type = #tpu.core_type<tc>, window_params = [{transform_indices = @transform_0, window_bounds = array<i64: 2, 1>}, {transform_indices = @transform_1, window_bounds = array<i64: 2, 1024>}, {transform_indices = @transform_2, window_bounds = array<i64: 2, 1024>}]} {
    %c0 = arith.constant 0 : index
    %c0_0 = arith.constant 0 : index
    %0 = vector.load %arg2[%c0, %c0_0] : memref<2x1024xf32, #tpu.memory_space<vmem>>, vector<2x1024xf32>
    %c0_1 = arith.constant 0 : index
    %c0_2 = arith.constant 0 : index
    %1 = vector.load %arg1[%c0_1, %c0_2] : memref<2x1xf32, #tpu.memory_space<vmem>>, vector<2x1xf32>
    %2 = vector.broadcast %1 : vector<2x1xf32> to vector<2x1024xf32>
    %3 = arith.mulf %0, %2 : vector<2x1024xf32>
    %c0_3 = arith.constant 0 : index
    %c0_4 = arith.constant 0 : index
    %4 = vector.load %arg3[%c0_3, %c0_4] : memref<2x1024xf32, #tpu.memory_space<vmem>>, vector<2x1024xf32>
    tpu.vector_store %arg3[%c0_3, %c0_4], %3 {strides = array<i32>} : memref<2x1024xf32, #tpu.memory_space<vmem>>, vector<2x1024xf32>,
    return
  }
  func.func @transform_0(%arg0: i32) -> (i32, i32) {
    %c0_i32 = arith.constant 0 : i32
    %c0_i32_0 = arith.constant 0 : i32
    return %arg0, %c0_i32 : i32, i32
  }
  func.func @transform_1(%arg0: i32) -> (i32, i32) {
    %c0_i32 = arith.constant 0 : i32
    %c0_i32_0 = arith.constant 0 : i32
    return %arg0, %c0_i32 : i32, i32
  }
  func.func @transform_2(%arg0: i32) -> (i32, i32) {
    %c0_i32 = arith.constant 0 : i32
    %c0_i32_0 = arith.constant 0 : i32
    return %arg0, %c0_i32 : i32, i32
  }
}

</mosaic_0001>

<llo_original>
// kernel: tpu_custom_call.1
$region0: #{tpu_custom_call.1}
  #allocation0 [shape = 'u32[]', space=smem, size = 0x4, offset = 0x4, fixed_abs, tag = 'smem constant byte address 0x4 - core index']
  #allocation1 [shape = 'u32[144,128]{1,0:T(1,128)}', space=vmem, size = 0x12000, scoped, tag = 'internal scratch']
  %s0 = inlined_call_operand.vmem [shape: f32[2,1], index: 0, kind: input, shape index: {}]
  %s1 = inlined_call_operand.hbm [shape: f32[2,1024], index: 1, kind: input, shape index: {}]
  %s2 = inlined_call_operand.hbm [shape: f32[2,1024], index: 2, kind: output, shape index: {}]
  %s3 = sld [smem:[#allocation0]]
  $region22: #{tpu_custom_call.1} parent=0
    _
  %s5 = ssub.s32 1, %s3
  %s6 = scalar_select 0, %s5, %s3
  $region1: #{tpu_custom_call.1} parent=0
    #allocation2 [shape = 'u8[8192]{0}', space=vmem, size = 0x2000, scoped, tag = 'input window, operand 1, single buffered']
    #allocation3 [shape = 's32[1]{0}', space=sflag, size = 0x4, scoped, tag = 'scoped memory for tpu_custom_call.1']
    #allocation4 [shape = 's32[1]{0}', space=sflag, size = 0x4, scoped, tag = 'scoped memory for tpu_custom_call.1']
    #allocation5 [shape = 'u8[8192]{0}', space=vmem, size = 0x2000, scoped, tag = 'output window, operand 0, single buffered']
    %7 = vsyncpa [#allocation3], 0
    %8 = vsyncpa [#allocation4], 0
    // Predicated region
    $region2: #{tpu_custom_call.1} parent=1 // pred_check
      _
    $region3: #{tpu_custom_call.1} parent=1 // pred_check_branch
      %10 = sbr.rel (0) target = $region5
    $region4: #{tpu_custom_call.1} parent=1 // pred_region
      _
    $region5: #{tpu_custom_call.1} parent=1 // pred_fallthru
      _
    // Predicated region
    $region6: #{tpu_custom_call.1} parent=1 // pred_check
      _
    $region7: #{tpu_custom_call.1} parent=1 // pred_check_branch
      %12 = sbr.rel (0) target = $region9
    $region8: #{tpu_custom_call.1} parent=1 // pred_region
      %s14 = ssub.s32 256, 256
      %15 = vsyncadd [#allocation3], %s14
      %s17 = sshll.u32 [#allocation2], 4
      %s18 = int_to_ptr.vmem [resolvable:$true] %s17
      %20 = dma.hbm_to_vmem [thread:$0]  %s1, 256, %s18, [#allocation3]
    $region9: #{tpu_custom_call.1} parent=1 // pred_fallthru
      _
    // Predicated region
    $region10: #{tpu_custom_call.1} parent=1 // pred_check
      _
    $region11: #{tpu_custom_call.1} parent=1 // pred_check_branch
      %22 = sbr.rel (0) target = $region13
    $region12: #{tpu_custom_call.1} parent=1 // pred_region
      %23 = dma.done [#allocation3], 256
    $region13: #{tpu_custom_call.1} parent=1 // pred_fallthru
      _
    %v24 = vld [vmem:[#allocation2] sm:$0xff]
    %v25 = vld [vmem:[#allocation2 + $0x8] sm:$0xff]
    %v26 = vld [vmem:[%s0] sm:$0x3]
    %28 = vset.pattern.permute.xlu0 0
    %29 = vperm.xlu0 %28, %v26
    %v30 = vpop.permute.xlu0 %29
    %v32 = vunpack.c.l.s4 269488144
    %v33 = vunpack.c.0.s8 %v32
    %v34 = vlaneseq
    %v35 = vshrl.u32 %v34, 7
    %v36 = vsub.s32 %v33, %v35
    %v37 = vrot.slane %v30, %v36
    %v39 = vmul.f32 %v24, %v37
    %v40 = vmul.f32 %v25, %v37
    %41 = vst [vmem:[#allocation5] sm:$0xff] %v39
    %42 = vst [vmem:[#allocation5 + $0x8] sm:$0xff] %v40
    // Predicated region
    $region14: #{tpu_custom_call.1} parent=1 // pred_check
      _
    $region15: #{tpu_custom_call.1} parent=1 // pred_check_branch
      %44 = sbr.rel (0) target = $region17
    $region16: #{tpu_custom_call.1} parent=1 // pred_region
      %s46 = ssub.s32 256, 256
      %47 = vsyncadd [#allocation4], %s46
      %s49 = sshll.u32 [#allocation5], 4
      %s50 = int_to_ptr.vmem [resolvable:$true] %s49
      %52 = dma.vmem_to_hbm [thread:$0]  %s50, 256, %s2, [#allocation4]
    $region17: #{tpu_custom_call.1} parent=1 // pred_fallthru
      _
    // Predicated region
    $region18: #{tpu_custom_call.1} parent=1 // pred_check
      _
    $region19: #{tpu_custom_call.1} parent=1 // pred_check_branch
      %54 = sbr.rel (0) target = $region21
    $region20: #{tpu_custom_call.1} parent=1 // pred_region
      %55 = dma.done [#allocation4], 256
    $region21: #{tpu_custom_call.1} parent=1 // pred_fallthru
      _
    %56 = vsyncpa [#allocation3], 1
    %57 = vsyncpa [#allocation4], 1

</llo_original>
